<compile_context>
chip_gen: v6e
topology: v6e:2x2x1
jax: 0.10.0
libtpu: 0.0.40
codegen_flags: <defaults>
</compile_context>

<pallas_src>
import jax
import jax.numpy as jnp
from jax import lax
from jax.experimental import pallas as pl
from jax.experimental.pallas import tpu as pltpu

LN_EPS = 1e-5  # PyTorch nn.LayerNorm default


def embed_kernel(tok_ids_ref,        # SMEM (N,) int32 — scalar prefetch
                 pos_slab_ref,       # VMEM (tile, D) f32 — positional slab
                 gamma_ref,          # VMEM (1, D) f32
                 beta_ref,           # VMEM (1, D) f32
                 tok_tab_hbm,        # HBM  (V, D) f32 — memory_space=pl.ANY
                 out_ref,            # VMEM (tile, D) f32
                 gbuf,               # VMEM (tile, D) f32 scratch (gather dst)
                 sem):               # DMA semaphore, shape (1,)
    i = pl.program_id(0)
    tile, d_model = out_ref.shape
    vocab = tok_tab_hbm.shape[0]
    base = i * tile

    # Issue one row-DMA per token in this tile (gather from HBM into VMEM).
    @pl.loop(0, tile)
    def _issue(r):
        tid = tok_ids_ref[base + r]
        tid = jnp.minimum(jnp.maximum(tid, 0), vocab - 1)   # clamp OOB ids
        pltpu.make_async_copy(tok_tab_hbm.at[tid], gbuf.at[r], sem.at[0]).start()

    # Drain: wait for all row copies (same-shaped dummy descriptor per copy).
    @pl.loop(0, tile)
    def _drain(r):
        pltpu.make_async_copy(tok_tab_hbm.at[0], gbuf.at[0], sem.at[0]).wait()

    # tok_emb + pos_emb, then LayerNorm over the feature axis (single pass stats).
    e = gbuf[...] + pos_slab_ref[...]
    inv_d = 1.0 / d_model
    s1 = jnp.sum(e, axis=-1, keepdims=True)
    s2 = jnp.sum(e * e, axis=-1, keepdims=True)
    mean = s1 * inv_d
    var = s2 * inv_d - mean * mean
    normed = (e - mean) * lax.rsqrt(var + LN_EPS)
    out_ref[...] = (normed * gamma_ref[...] + beta_ref[...]).astype(out_ref.dtype)


def embedding_forward(x, tok_tab, pos_tab, gamma, beta, *, max_rows_per_tile=256):
    """x: (B, S) int token ids -> (B, S, D) f32: LayerNorm(tok_emb[x] + pos_emb[0..S-1])."""
    B, S = x.shape
    V, D = tok_tab.shape
    P = pos_tab.shape[0]
    assert S <= P, "seq_len must be <= positional table length"
    N = B * S

    # Tile = whole sequences, as many as fit the row budget, row count multiple
    # of 8 (f32 sublane) unless the tile is the full token axis.
    budget = max(1, max_rows_per_tile // S)
    candidates = [d for d in range(1, B + 1)
                  if B % d == 0 and d <= budget and (d * S) % 8 == 0]
    seqs_per_tile = max(candidates) if candidates else B
    tile = seqs_per_tile * S
    grid = (N // tile,)

    tok_ids = x.reshape(N).astype(jnp.int32)
    pos_slab = jnp.tile(pos_tab[:S].astype(jnp.float32), (seqs_per_tile, 1))  # (tile, D)
    gamma2 = gamma.reshape(1, D).astype(jnp.float32)
    beta2 = beta.reshape(1, D).astype(jnp.float32)
    tok_tab_f32 = tok_tab.astype(jnp.float32)

    out = pl.pallas_call(
        embed_kernel,
        out_shape=jax.ShapeDtypeStruct((N, D), jnp.float32),
        grid_spec=pltpu.PrefetchScalarGridSpec(
            num_scalar_prefetch=1,
            grid=grid,
            in_specs=[
                pl.BlockSpec((tile, D), lambda i, ids: (0, 0)),   # positional slab
                pl.BlockSpec((1, D), lambda i, ids: (0, 0)),      # gamma
                pl.BlockSpec((1, D), lambda i, ids: (0, 0)),      # beta
                pl.BlockSpec(memory_space=pl.ANY),                # token table (HBM)
            ],
            out_specs=pl.BlockSpec((tile, D), lambda i, ids: (i, 0)),
            scratch_shapes=[
                pltpu.VMEM((tile, D), jnp.float32),               # gather buffer
                pltpu.SemaphoreType.DMA((1,)),
            ],
        ),
        compiler_params=pltpu.CompilerParams(
            dimension_semantics=("parallel",)),
    )(tok_ids, pos_slab, gamma2, beta2, tok_tab_f32)
    return out.reshape(B, S, D)


def reference_forward(x, tok_tab, pos_tab, gamma, beta):
    B, S = x.shape
    pos = jnp.arange(S, dtype=jnp.int32)[None, :].repeat(B, axis=0)
    e = jnp.take(tok_tab, x, axis=0) + jnp.take(pos_tab, pos, axis=0)
    mean = jnp.mean(e, axis=-1, keepdims=True)
    var = jnp.mean((e - mean) ** 2, axis=-1, keepdims=True)
    return (e - mean) * lax.rsqrt(var + LN_EPS) * gamma + beta


if __name__ == "__main__":
    # config: max_len=6 -> pos table rows = max_len + 2 = 8; d_model=128; vocab=32
    config_max_len = 6
    max_len = config_max_len + 2       # 8
    d_model = 128
    vocab_size = 32
    batch = 2
    seq_len = 8                        # <= max_len

    key = jax.random.PRNGKey(0)
    k_tok, k_pos, k_x = jax.random.split(key, 3)

    # nn.Embedding default init ~ N(0, 1); nn.LayerNorm: gamma=1, beta=0.
    tok_tab = jax.random.normal(k_tok, (vocab_size, d_model), dtype=jnp.float32)
    pos_tab = jax.random.normal(k_pos, (max_len, d_model), dtype=jnp.float32)
    gamma = jnp.ones((d_model,), dtype=jnp.float32)
    beta = jnp.zeros((d_model,), dtype=jnp.float32)

    x = jax.random.randint(k_x, (batch, seq_len), 0, vocab_size, dtype=jnp.int32)

    out = embedding_forward(x, tok_tab, pos_tab, gamma, beta)
    out = jax.block_until_ready(out)

    ref = reference_forward(x, tok_tab, pos_tab, gamma, beta)
    assert out.shape == (batch, seq_len, d_model)
    assert jnp.allclose(out, ref, atol=1e-4, rtol=1e-4), "mismatch vs reference"

    print("KERNEL_OK")
</pallas_src>

<mosaic_0001>
module attributes {stable_mosaic.version = 11 : i64} {
  func.func @embed_kernel(%arg0: i32, %arg1: memref<16xi32, #tpu.memory_space<smem>>, %arg2: memref<16x128xf32, #tpu.memory_space<vmem>>, %arg3: memref<1x128xf32, #tpu.memory_space<vmem>>, %arg4: memref<1x128xf32, #tpu.memory_space<vmem>>, %arg5: memref<32x128xf32, #tpu.memory_space<any>>, %arg6: memref<16x128xf32, #tpu.memory_space<vmem>>, %arg7: memref<16x128xf32, #tpu.memory_space<vmem>>, %arg8: memref<1x!tpu.dma_semaphore, #tpu.memory_space<semaphore_mem>>) attributes {dimension_semantics = [#tpu.dimension_semantics<parallel>], iteration_bounds = array<i64: 1>, scalar_prefetch = 1 : i64, scratch_operands = 2 : i64, tpu.core_type = #tpu.core_type<tc>, window_params = [{pipeline_mode = #tpu.pipeline_mode<synchronous>, transform_indices = @transform_0, window_bounds = array<i64: 16, 128>}, {pipeline_mode = #tpu.pipeline_mode<synchronous>, transform_indices = @transform_1, window_bounds = array<i64: 1, 128>}, {pipeline_mode = #tpu.pipeline_mode<synchronous>, transform_indices = @transform_2, window_bounds = array<i64: 1, 128>}, {}, {transform_indices = @transform_4, window_bounds = array<i64: 16, 128>}]} {
    %c16_i32 = arith.constant 16 : i32
    %0 = arith.muli %arg0, %c16_i32 : i32
    %c0_i32 = arith.constant 0 : i32
    %c16_i32_0 = arith.constant 16 : i32
    %1 = arith.addi %c0_i32, %c16_i32_0 : i32
    %c1_i32 = arith.constant 1 : i32
    scf.for %arg9 = %c0_i32 to %1 step %c1_i32  : i32 {
      %c1_i32_18 = arith.constant 1 : i32
      %31 = arith.muli %arg9, %c1_i32_18 : i32
      %c0_i32_19 = arith.constant 0 : i32
      %32 = arith.addi %c0_i32_19, %31 : i32
      %33 = arith.addi %0, %32 : i32
      %34 = arith.index_cast %33 : i32 to index
      %35 = memref.load %arg1[%34] : memref<16xi32, #tpu.memory_space<smem>>
      %c0_i32_20 = arith.constant 0 : i32
      %36 = arith.maxsi %35, %c0_i32_20 : i32
      %c31_i32 = arith.constant 31 : i32
      %37 = arith.minsi %36, %c31_i32 : i32
      %c0_i32_21 = arith.constant 0 : i32
      %c0_i32_22 = arith.constant 0 : i32
      %38 = tpu.memref_slice %arg5[%37, %c0_i32_22] : memref<32x128xf32, #tpu.memory_space<any>> -> memref<1x128xf32, #tpu.memory_space<any>>
      %39 = tpu.memref_squeeze %38 : memref<1x128xf32, #tpu.memory_space<any>> -> memref<128xf32, #tpu.memory_space<any>>
      %c0_i32_23 = arith.constant 0 : i32
      %40 = tpu.memref_slice %arg7[%32, %c0_i32_23] : memref<16x128xf32, #tpu.memory_space<vmem>> -> memref<1x128xf32, #tpu.memory_space<vmem>>
      %41 = tpu.memref_squeeze %40 : memref<1x128xf32, #tpu.memory_space<vmem>> -> memref<128xf32, #tpu.memory_space<vmem>>
      %42 = tpu.memref_slice %arg8[%c0_i32_21] : memref<1x!tpu.dma_semaphore, #tpu.memory_space<semaphore_mem>> -> memref<1x!tpu.dma_semaphore, #tpu.memory_space<semaphore_mem>>
      %43 = tpu.memref_squeeze %42 : memref<1x!tpu.dma_semaphore, #tpu.memory_space<semaphore_mem>> -> memref<!tpu.dma_semaphore, #tpu.memory_space<semaphore_mem>>
      tpu.enqueue_dma source(%39 : memref<128xf32, #tpu.memory_space<any>>) target(%41 : memref<128xf32, #tpu.memory_space<vmem>>) target_semaphore(%43 : memref<!tpu.dma_semaphore, #tpu.memory_space<semaphore_mem>>)
    }
    %c16_i32_1 = arith.constant 16 : i32
    %c0_i32_2 = arith.constant 0 : i32
    %c16_i32_3 = arith.constant 16 : i32
    %2 = arith.addi %c0_i32_2, %c16_i32_3 : i32
    %c1_i32_4 = arith.constant 1 : i32
    scf.for %arg9 = %c0_i32_2 to %2 step %c1_i32_4  : i32 {
      %c0_i32_18 = arith.constant 0 : i32
      %c0_i32_19 = arith.constant 0 : i32
      %c0_i32_20 = arith.constant 0 : i32
      %c0_i32_21 = arith.constant 0 : i32
      %31 = tpu.memref_slice %arg5[%c0_i32_18, %c0_i32_21] : memref<32x128xf32, #tpu.memory_space<any>> -> memref<1x128xf32, #tpu.memory_space<any>>
      %32 = tpu.memref_squeeze %31 : memref<1x128xf32, #tpu.memory_space<any>> -> memref<128xf32, #tpu.memory_space<any>>
      %c0_i32_22 = arith.constant 0 : i32
      %33 = tpu.memref_slice %arg7[%c0_i32_19, %c0_i32_22] : memref<16x128xf32, #tpu.memory_space<vmem>> -> memref<1x128xf32, #tpu.memory_space<vmem>>
      %34 = tpu.memref_squeeze %33 : memref<1x128xf32, #tpu.memory_space<vmem>> -> memref<128xf32, #tpu.memory_space<vmem>>
      %35 = tpu.memref_slice %arg8[%c0_i32_20] : memref<1x!tpu.dma_semaphore, #tpu.memory_space<semaphore_mem>> -> memref<1x!tpu.dma_semaphore, #tpu.memory_space<semaphore_mem>>
      %36 = tpu.memref_squeeze %35 : memref<1x!tpu.dma_semaphore, #tpu.memory_space<semaphore_mem>> -> memref<!tpu.dma_semaphore, #tpu.memory_space<semaphore_mem>>
      tpu.wait_dma2 semaphore(%36 : memref<!tpu.dma_semaphore, #tpu.memory_space<semaphore_mem>>) src(%32 : memref<128xf32, #tpu.memory_space<any>>) dst(%34 : memref<128xf32, #tpu.memory_space<vmem>>)
    }
    %c0 = arith.constant 0 : index
    %c0_5 = arith.constant 0 : index
    %3 = vector.load %arg7[%c0, %c0_5] : memref<16x128xf32, #tpu.memory_space<vmem>>, vector<16x128xf32>
    %c0_6 = arith.constant 0 : index
    %c0_7 = arith.constant 0 : index
    %4 = vector.load %arg2[%c0_6, %c0_7] : memref<16x128xf32, #tpu.memory_space<vmem>>, vector<16x128xf32>
    %5 = arith.addf %3, %4 : vector<16x128xf32>
    %cst = arith.constant dense<0.000000e+00> : vector<16xf32>
    %6 = vector.multi_reduction <add>, %5, %cst [1] : vector<16x128xf32> to vector<16xf32>
    %7 = vector.shape_cast %6 : vector<16xf32> to vector<16x1xf32>
    %8 = arith.mulf %5, %5 : vector<16x128xf32>
    %cst_8 = arith.constant dense<0.000000e+00> : vector<16xf32>
    %9 = vector.multi_reduction <add>, %8, %cst_8 [1] : vector<16x128xf32> to vector<16xf32>
    %10 = vector.shape_cast %9 : vector<16xf32> to vector<16x1xf32>
    %cst_9 = arith.constant 7.812500e-03 : f32
    %11 = vector.broadcast %cst_9 : f32 to vector<16x1xf32>
    %12 = arith.mulf %7, %11 : vector<16x1xf32>
    %cst_10 = arith.constant 7.812500e-03 : f32
    %13 = vector.broadcast %cst_10 : f32 to vector<16x1xf32>
    %14 = arith.mulf %10, %13 : vector<16x1xf32>
    %15 = arith.mulf %12, %12 : vector<16x1xf32>
    %16 = arith.subf %14, %15 : vector<16x1xf32>
    %17 = vector.broadcast %12 : vector<16x1xf32> to vector<16x128xf32>
    %18 = arith.subf %5, %17 : vector<16x128xf32>
    %cst_11 = arith.constant 9.99999974E-6 : f32
    %19 = vector.broadcast %cst_11 : f32 to vector<16x1xf32>
    %20 = arith.addf %16, %19 : vector<16x1xf32>
    %21 = math.rsqrt %20 : vector<16x1xf32>
    %22 = vector.broadcast %21 : vector<16x1xf32> to vector<16x128xf32>
    %23 = arith.mulf %18, %22 : vector<16x128xf32>
    %c0_12 = arith.constant 0 : index
    %c0_13 = arith.constant 0 : index
    %24 = vector.load %arg3[%c0_12, %c0_13] : memref<1x128xf32, #tpu.memory_space<vmem>>, vector<1x128xf32>
    %25 = vector.broadcast %24 : vector<1x128xf32> to vector<16x128xf32>
    %26 = arith.mulf %23, %25 : vector<16x128xf32>
    %c0_14 = arith.constant 0 : index
    %c0_15 = arith.constant 0 : index
    %27 = vector.load %arg4[%c0_14, %c0_15] : memref<1x128xf32, #tpu.memory_space<vmem>>, vector<1x128xf32>
    %28 = vector.broadcast %27 : vector<1x128xf32> to vector<16x128xf32>
    %29 = arith.addf %26, %28 : vector<16x128xf32>
    %c0_16 = arith.constant 0 : index
    %c0_17 = arith.constant 0 : index
    %30 = vector.load %arg6[%c0_16, %c0_17] : memref<16x128xf32, #tpu.memory_space<vmem>>, vector<16x128xf32>
    tpu.vector_store %arg6[%c0_16, %c0_17], %29 {strides = array<i32>} : memref<16x128xf32, #tpu.memory_space<vmem>>, vector<16x128xf32>,
    return
  }
  func.func @transform_0(%arg0: i32, %arg1: memref<16xi32, #tpu.memory_space<smem>>) -> (i32, i32) {
    %c0_i32 = arith.constant 0 : i32
    %c0_i32_0 = arith.constant 0 : i32
    %c0_i32_1 = arith.constant 0 : i32
    return %c0_i32, %c0_i32_0 : i32, i32
  }
  func.func @transform_1(%arg0: i32, %arg1: memref<16xi32, #tpu.memory_space<smem>>) -> (i32, i32) {
    %c0_i32 = arith.constant 0 : i32
    %c0_i32_0 = arith.constant 0 : i32
    %c0_i32_1 = arith.constant 0 : i32
    return %c0_i32, %c0_i32_0 : i32, i32
  }
  func.func @transform_2(%arg0: i32, %arg1: memref<16xi32, #tpu.memory_space<smem>>) -> (i32, i32) {
    %c0_i32 = arith.constant 0 : i32
    %c0_i32_0 = arith.constant 0 : i32
    %c0_i32_1 = arith.constant 0 : i32
    return %c0_i32, %c0_i32_0 : i32, i32
  }
  func.func @transform_4(%arg0: i32, %arg1: memref<16xi32, #tpu.memory_space<smem>>) -> (i32, i32) {
    %c0_i32 = arith.constant 0 : i32
    %c0_i32_0 = arith.constant 0 : i32
    return %arg0, %c0_i32 : i32, i32
  }
}

</mosaic_0001>

<llo_original>
// kernel: tpu_custom_call.1
$region0: #{tpu_custom_call.1}
  #allocation0 [shape = 'u32[]', space=smem, size = 0x4, offset = 0x4, fixed_abs, tag = 'smem constant byte address 0x4 - core index']
  #allocation1 [shape = 'u32[144,128]{1,0:T(1,128)}', space=vmem, size = 0x12000, scoped, tag = 'internal scratch']
  #allocation2 [shape = 'f32[16,128]{1,0:T(8,128)}', space=vmem, size = 0x2000, scoped, tag = 'scratch operand']
  #allocation3 [shape = 's32[1]{0}', space=sflag, size = 0x4, scoped, tag = 'scratch operand']
  #allocation4 [shape = 's32[1]{0}', space=sflag, size = 0x4, scoped, tag = 'scoped memory for tpu_custom_call.1']
  #allocation5 [shape = 'u8[512]{0}', space=smem, size = 0x200, scoped, tag = 'prefetched SMEM operand 0']
  #allocation10 [shape = 's32[]', space=sflag, size = 0x4, offset = 0, fixed_abs, tag = 'sflag constant byte address 0x0 - dummy sync flag']
  #allocation11 [shape = 's32[]', space=sflag, size = 0x4, offset = 0, fixed_abs, tag = 'sflag constant byte address 0x0 - dummy sync flag']
  #allocation12 [shape = 'u32[]', space=smem, size = 0x4, offset = 0x44, fixed_abs, tag = 'smem constant byte address 0x44 - assertion arg 0']
  #allocation13 [shape = 'u32[]', space=smem, size = 0x4, offset = 0x48, fixed_abs, tag = 'smem constant byte address 0x48 - assertion arg 1']
  %s0 = inlined_call_operand.hbm [shape: s32[16], index: 0, kind: input, shape index: {}]
  %s1 = inlined_call_operand.hbm [shape: f32[16,128], index: 1, kind: input, shape index: {}]
  %s2 = inlined_call_operand.vmem [shape: f32[1,128], index: 2, kind: input, shape index: {}]
  %s3 = inlined_call_operand.vmem [shape: f32[1,128], index: 3, kind: input, shape index: {}]
  %s4 = inlined_call_operand.hbm [shape: f32[32,128], index: 4, kind: input, shape index: {}]
  %s5 = inlined_call_operand.hbm [shape: f32[16,128], index: 5, kind: output, shape index: {}]
  %s6 = sld [smem:[#allocation0]]
  $region44: #{tpu_custom_call.1} parent=0
    _
  %s8 = ssub.s32 1, %s6
  %s9 = scalar_select 0, %s8, %s6
  %11 = dma.hbm_to_smem %s0, 16, [#allocation5], [#allocation4]
  %12 = dma.done [#allocation4], 16
  %13 = sfence
  $region1: #{tpu_custom_call.1} parent=0
    #allocation6 [shape = 'u8[8192]{0}', space=vmem, size = 0x2000, scoped, tag = 'input window, operand 1, single buffered']
    #allocation7 [shape = 's32[1]{0}', space=sflag, size = 0x4, scoped, tag = 'scoped memory for tpu_custom_call.1']
    #allocation8 [shape = 's32[1]{0}', space=sflag, size = 0x4, scoped, tag = 'scoped memory for tpu_custom_call.1']
    #allocation9 [shape = 'u8[8192]{0}', space=vmem, size = 0x2000, scoped, tag = 'output window, operand 0, single buffered']
    %14 = vsyncpa [#allocation7], 0
    %15 = vsyncpa [#allocation8], 0
    // Predicated region
    $region2: #{tpu_custom_call.1} parent=1 // pred_check
      _
    $region3: #{tpu_custom_call.1} parent=1 // pred_check_branch
      %17 = sbr.rel (0) target = $region5
    $region4: #{tpu_custom_call.1} parent=1 // pred_region
      %s19 = ssub.s32 256, 256
      %20 = vsyncadd [#allocation7], %s19
      %s21 = sshll.u32 [#allocation6], 4
      %s22 = int_to_ptr.vmem [resolvable:$true] %s21
      %27 = dma.hbm_to_vmem [thread:$0]  %s1, 256, %s22, [#allocation7], 128, 128, 8
    $region5: #{tpu_custom_call.1} parent=1 // pred_fallthru
      _
    // Predicated region
    $region6: #{tpu_custom_call.1} parent=1 // pred_check
      _
    $region7: #{tpu_custom_call.1} parent=1 // pred_check_branch
      %29 = sbr.rel (0) target = $region9
    $region8: #{tpu_custom_call.1} parent=1 // pred_region
      _
    $region9: #{tpu_custom_call.1} parent=1 // pred_fallthru
      _
    // Predicated region
    $region10: #{tpu_custom_call.1} parent=1 // pred_check
      _
    $region11: #{tpu_custom_call.1} parent=1 // pred_check_branch
      %31 = sbr.rel (0) target = $region13
    $region12: #{tpu_custom_call.1} parent=1 // pred_region
      _
    $region13: #{tpu_custom_call.1} parent=1 // pred_fallthru
      _
    // Predicated region
    $region14: #{tpu_custom_call.1} parent=1 // pred_check
      _
    $region15: #{tpu_custom_call.1} parent=1 // pred_check_branch
      %33 = sbr.rel (0) target = $region17
    $region16: #{tpu_custom_call.1} parent=1 // pred_region
      %34 = dma.done [#allocation7], 256
    $region17: #{tpu_custom_call.1} parent=1 // pred_fallthru
      _
    %s35 = smul.u32 0, 16
    loop: start=0, step=1, limit=16
    $region18: #{tpu_custom_call.1} parent=1 // loop_pre_header
      _
    $region19: #{tpu_custom_call.1} parent=1 // loop_header
      %s37 = sphi 0, %s41
      %p38 = scmp.ge.s32.totalorder %s37, 16
    $region20: #{tpu_custom_call.1} parent=1 // loop_header_branch
      %40 = sbr.rel (%p38) target = $region24
    $region21: #{tpu_custom_call.1} parent=1 // loop_body
      %s42 = sadd.s32 %s35, %s37
      %s43 = sld [smem:[#allocation5 + %s42]]
      %p44 = scmp.gt.s32.totalorder %s43, 0
      %s45 = scalar_select %p44, %s43, 0
      %p46 = scmp.lt.s32.totalorder %s45, 31
      %s47 = scalar_select %p46, %s45, 31
      %s48 = smul.addr %s47, 16
      %s49 = scalar_lea.hbm %s4, %s48
      %s50 = scalar_lea.vmem [#allocation2], %s37
      // Predicated region
      $region25: #{tpu_custom_call.1} parent=21 // pred_check
        _
      $region26: #{tpu_custom_call.1} parent=21 // pred_check_branch
        %52 = sbr.rel target = $region28
      $region27: #{tpu_custom_call.1} parent=21 // pred_region
        %53 = sst [smem:[#allocation12]] [#allocation11]
        %54 = sst [smem:[#allocation13]] [#allocation10]
      $region28: #{tpu_custom_call.1} parent=21 // pred_fallthru
        _
      %56 = shalt.err (0)
      %s58 = sshll.u32 %s50, 4
      %s59 = int_to_ptr.vmem [resolvable:$true] %s58
      %61 = dma.hbm_to_vmem [thread:$0]  %s49, 16, %s59, [#allocation3]
    $region22: #{tpu_custom_call.1} parent=1 // loop_footer
      %s41 = sadd.s32 1, %s37
    $region23: #{tpu_custom_call.1} parent=1 // loop_footer_branch
      %36 = sbr.rel target = $region19
    $region24: #{tpu_custom_call.1} parent=1 // loop_exit
      _
    loop: start=0, step=1, limit=16
    $region29: #{tpu_custom_call.1} parent=1 // loop_pre_header
      _
    $region30: #{tpu_custom_call.1} parent=1 // loop_header
      %s63 = sphi 0, %s67
      %p64 = scmp.ge.s32.totalorder %s63, 16
    $region31: #{tpu_custom_call.1} parent=1 // loop_header_branch
      %66 = sbr.rel (%p64) target = $region35
    $region32: #{tpu_custom_call.1} parent=1 // loop_body
      %69 = dma.done [#allocation3], 16
    $region33: #{tpu_custom_call.1} parent=1 // loop_footer
      %s67 = sadd.s32 1, %s63
    $region34: #{tpu_custom_call.1} parent=1 // loop_footer_branch
      %62 = sbr.rel target = $region30
    $region35: #{tpu_custom_call.1} parent=1 // loop_exit
      _
    %v70 = vld [vmem:[#allocation2] sm:$0xff]
    %v71 = vld [vmem:[#allocation2 + $0x8] sm:$0xff]
    %v72 = vld [vmem:[#allocation6] sm:$0xff]
    %v73 = vld [vmem:[#allocation6 + $0x8] sm:$0xff]
    %v74 = vadd.f32 %v70, %v72
    %v75 = vadd.f32 %v71, %v73
    %76 = vadd.xlane.f32.xlu0 %v74
    %v77 = vpop.xlane.xlu0 %76
    %78 = vadd.xlane.f32.xlu0 %v75
    %v79 = vpop.xlane.xlu0 %78
    %v80 = vmul.f32 %v74, %v74
    %v81 = vmul.f32 %v75, %v75
    %82 = vadd.xlane.f32.xlu0 %v80
    %v83 = vpop.xlane.xlu0 %82
    %84 = vadd.xlane.f32.xlu0 %v81
    %v85 = vpop.xlane.xlu0 %84
    %v86 = vmul.f32 %v77, 0.0078125
    %v87 = vmul.f32 %v79, 0.0078125
    %v88 = vmul.f32 %v83, 0.0078125
    %v89 = vmul.f32 %v85, 0.0078125
    %v90 = vmul.f32 %v86, %v86
    %v91 = vmul.f32 %v87, %v87
    %v92 = vsub.f32 %v88, %v90
    %v93 = vsub.f32 %v89, %v91
    %v94 = vsub.f32 %v74, %v86
    %v95 = vsub.f32 %v75, %v87
    %v96 = vadd.f32 %v92, 1e-05
    %v97 = vadd.f32 %v93, 1e-05
    %v98 = vrsqrt.pop %v96
    %v99 = vrsqrt.pop %v97
    %v100 = vmul.f32 %v94, %v98
    %v101 = vmul.f32 %v95, %v99
    %v102 = vld [vmem:[%s2] sm:$0x1]
    %v104 = vlaneseq
    %v105 = vshrl.u32 %v104, 7
    %v106 = vsub.s32 0, %v105
    %v107 = vrot.slane %v102, %v106
    %v109 = vmul.f32 %v100, %v107
    %v110 = vmul.f32 %v101, %v107
    %v111 = vld [vmem:[%s3] sm:$0x1]
    %v113 = vlaneseq
    %v114 = vshrl.u32 %v113, 7
    %v115 = vsub.s32 0, %v114
    %v116 = vrot.slane %v111, %v115
    %v118 = vadd.f32 %v109, %v116
    %v119 = vadd.f32 %v110, %v116
    %120 = vst [vmem:[#allocation9] sm:$0xff] %v118
    %121 = vst [vmem:[#allocation9 + $0x8] sm:$0xff] %v119
    // Predicated region
    $region36: #{tpu_custom_call.1} parent=1 // pred_check
      _
    $region37: #{tpu_custom_call.1} parent=1 // pred_check_branch
      %123 = sbr.rel (0) target = $region39
    $region38: #{tpu_custom_call.1} parent=1 // pred_region
      %s125 = ssub.s32 256, 256
      %126 = vsyncadd [#allocation8], %s125
      %s127 = sshll.u32 [#allocation9], 4
      %s128 = int_to_ptr.vmem [resolvable:$true] %s127
      %133 = dma.vmem_to_hbm [thread:$0]  %s128, 256, %s5, [#allocation8], 128, 128, 8
    $region39: #{tpu_custom_call.1} parent=1 // pred_fallthru
      _
    // Predicated region
    $region40: #{tpu_custom_call.1} parent=1 // pred_check
      _
    $region41: #{tpu_custom_call.1} parent=1 // pred_check_branch
      %135 = sbr.rel (0) target = $region43
    $region42: #{tpu_custom_call.1} parent=1 // pred_region
      %136 = dma.done [#allocation8], 256
    $region43: #{tpu_custom_call.1} parent=1 // pred_fallthru
      _
    %137 = vsyncpa [#allocation7], 1
    %138 = vsyncpa [#allocation8], 1
  %139 = vsyncmov [#allocation3]
  %s140 = vpop.sfrf %139
  %p141 = scmp.eq.s32.totalorder %s140, 0
  %p142 = pneg %p141
  %144 = shalt.err (%p142)

</llo_original>
